<compile_context>
chip_gen: v7x
topology: tpu7x:2x2x1
jax: 0.10.0
libtpu: 0.0.40
codegen_flags: <defaults>
</compile_context>

<pallas_src>
import math
import functools

import jax
import jax.numpy as jnp
import numpy as np
from jax.experimental import pallas as pl
from jax.experimental.pallas import tpu as pltpu

# --- synthetic config (small, consistent with the module) ---
BATCH = 2
SEQ = 8
HIDDEN = 32
NUM_HEADS = 4
HEAD_DIM = HIDDEN // NUM_HEADS
INTERMEDIATE = 64
LN_EPS = 1e-12


def _gelu_new(x):
    # ACT2FN['gelu_new'] — tanh approximation of GELU (f32 math).
    return 0.5 * x * (1.0 + jnp.tanh(math.sqrt(2.0 / math.pi) * (x + 0.044715 * x * x * x)))


def _layernorm(x, gamma, beta, eps):
    mean = jnp.mean(x, axis=-1, keepdims=True)
    xc = x - mean
    var = jnp.mean(xc * xc, axis=-1, keepdims=True)
    return xc * jax.lax.rsqrt(var + eps) * gamma + beta


def bert_layer_kernel(x_ref, mask_ref, wqkv_ref, bqkv_ref, wao_ref, bao_ref,
                      ln1g_ref, ln1b_ref, wi_ref, bi_ref, wo_ref, bo_ref,
                      ln2g_ref, ln2b_ref, out_ref, *, num_heads, head_dim):
    hidden = num_heads * head_dim

    x = x_ref[...]                                     # (T, H) f32, T = B*S tokens

    # --- BertSelfAttention: fused Q/K/V projection, one wide lane-dense matmul ---
    qkv = jnp.dot(x.astype(jnp.bfloat16), wqkv_ref[...],
                  preferred_element_type=jnp.float32) + bqkv_ref[...]   # (T, 3H) f32

    def to_heads(off):
        # (T, 3H) lane-slab -> (NH, T, Dh): per-head lane slices stacked along a new
        # leading (vreg-index) dim.  Pure layout plumbing, no extra matmuls.
        parts = [qkv[:, off + h * head_dim: off + (h + 1) * head_dim][None]
                 for h in range(num_heads)]
        return jnp.concatenate(parts, axis=0).astype(jnp.bfloat16)

    q = to_heads(0)                                    # (NH, T, Dh) bf16
    k = to_heads(hidden)
    v = to_heads(2 * hidden)

    scale = 1.0 / math.sqrt(head_dim)

    # scores = q @ k^T, ONE dot_general batched over heads (covers all batches at
    # once; cross-batch + padded-key entries are killed by the additive mask).
    scores = jax.lax.dot_general(q, k, (((2,), (2,)), ((0,), (0,))),
                                 preferred_element_type=jnp.float32)    # (NH, T, T) f32
    scores = scores * scale + mask_ref[...]            # mask (1, T, T) broadcasts over heads

    # numerically-stable softmax over keys (f32); divide -> EUP approx reciprocal.
    scores = scores - jnp.max(scores, axis=-1, keepdims=True)
    probs = jnp.exp(scores)
    probs = probs * pl.reciprocal(jnp.sum(probs, axis=-1, keepdims=True), approx=True)

    ctx = jax.lax.dot_general(probs.astype(jnp.bfloat16), v,
                              (((2,), (1,)), ((0,), (0,))),
                              preferred_element_type=jnp.float32)       # (NH, T, Dh) f32

    # heads -> lanes: (T, H); the over-heads reduction of the self-output dense is
    # then folded into a single (T,H)@(H,H) MXU contraction (== concat + matmul).
    ctx_flat = jnp.concatenate([ctx[h] for h in range(num_heads)], axis=-1)   # (T, H)
    attn_dense = jnp.dot(ctx_flat.astype(jnp.bfloat16), wao_ref[...],
                         preferred_element_type=jnp.float32) + bao_ref[...]

    # --- BertSelfOutput: residual + LayerNorm (dropout = identity) ---
    attn = _layernorm(attn_dense + x, ln1g_ref[...], ln1b_ref[...], LN_EPS)

    # --- BertIntermediate: dense + gelu_new (f32 activation math) ---
    inter = jnp.dot(attn.astype(jnp.bfloat16), wi_ref[...],
                    preferred_element_type=jnp.float32) + bi_ref[...]
    inter = _gelu_new(inter)

    # --- BertOutput: dense + residual + LayerNorm (dropout = identity) ---
    ffn = jnp.dot(inter.astype(jnp.bfloat16), wo_ref[...],
                  preferred_element_type=jnp.float32) + bo_ref[...]
    out = _layernorm(ffn + attn, ln2g_ref[...], ln2b_ref[...], LN_EPS)

    out_ref[...] = out.astype(out_ref.dtype)


def bert_layer_forward(x, mask_add, params):
    B, S, H = x.shape
    T = B * S
    NH, Dh, I = NUM_HEADS, HEAD_DIM, INTERMEDIATE

    # Fused QKV weight [Wq | Wk | Wv] (lane-major, per-head columns contiguous);
    # MXU-operand weights shipped in bf16, biases / LN params stay f32.
    wqkv = jnp.concatenate([params["wq"], params["wk"], params["wv"]], axis=1).astype(jnp.bfloat16)
    bqkv = jnp.concatenate([params["bq"], params["bk"], params["bv"]], axis=1)            # (1, 3H) f32

    # Full additive attention mask over the flattened token axis:
    #  same-batch entries carry the per-key padding mask (0 / -10000),
    #  cross-batch entries get -1e9 (exp underflows to exactly 0).
    batch_ids = jnp.repeat(jnp.arange(B), S)                           # (T,)
    key_add = mask_add.reshape(T)                                      # (T,)
    same = batch_ids[:, None] == batch_ids[None, :]                    # (T, T)
    mask_full = jnp.where(same, key_add[None, :], -1e9).astype(jnp.float32)[None]   # (1, T, T)

    operands = (x.reshape(T, H), mask_full, wqkv, bqkv,
                params["wao"].astype(jnp.bfloat16), params["bao"],
                params["ln1g"], params["ln1b"],
                params["wi"].astype(jnp.bfloat16), params["bi"],
                params["wo"].astype(jnp.bfloat16), params["bo"],
                params["ln2g"], params["ln2b"])

    kernel = functools.partial(bert_layer_kernel, num_heads=NH, head_dim=Dh)

    # Advisory cost estimate so XLA can schedule neighbouring ops around the kernel.
    flops = (2 * T * H * 3 * H            # fused QKV
             + 2 * (2 * NH * T * T * Dh)  # scores + probs@V
             + 2 * T * H * H              # self-output dense
             + 2 * T * H * I              # FFN in
             + 2 * T * I * H)             # FFN out
    transcendentals = NH * T * T + T * I + 2 * T + NH * T   # exp, tanh(gelu), rsqrt(LN), recip
    bytes_accessed = sum(int(o.size) * o.dtype.itemsize for o in operands) + T * H * 4
    cost = pl.CostEstimate(flops=flops, transcendentals=transcendentals,
                           bytes_accessed=bytes_accessed)

    # Single invocation (no grid): every operand is a full block resident in VMEM once.
    out2d = pl.pallas_call(
        kernel,
        out_shape=jax.ShapeDtypeStruct((T, H), jnp.float32),
        in_specs=[pl.BlockSpec(memory_space=pltpu.MemorySpace.VMEM) for _ in operands],
        out_specs=pl.BlockSpec(memory_space=pltpu.MemorySpace.VMEM),
        cost_estimate=cost,
    )(*operands)
    return out2d.reshape(B, S, H)


# ------------------------- parameter init + JAX reference -------------------------

def init_params(key):
    keys = jax.random.split(key, 16)

    def lin(kw, kb, fin, fout):
        w = jax.random.normal(kw, (fin, fout), jnp.float32) * 0.02
        b = jax.random.normal(kb, (1, fout), jnp.float32) * 0.02
        return w, b

    p = {}
    p["wq"], p["bq"] = lin(keys[0], keys[1], HIDDEN, HIDDEN)
    p["wk"], p["bk"] = lin(keys[2], keys[3], HIDDEN, HIDDEN)
    p["wv"], p["bv"] = lin(keys[4], keys[5], HIDDEN, HIDDEN)
    p["wao"], p["bao"] = lin(keys[6], keys[7], HIDDEN, HIDDEN)
    p["ln1g"] = jnp.ones((1, HIDDEN), jnp.float32)
    p["ln1b"] = jnp.zeros((1, HIDDEN), jnp.float32)
    p["wi"], p["bi"] = lin(keys[8], keys[9], HIDDEN, INTERMEDIATE)
    p["wo"], p["bo"] = lin(keys[10], keys[11], INTERMEDIATE, HIDDEN)
    p["ln2g"] = jnp.ones((1, HIDDEN), jnp.float32)
    p["ln2b"] = jnp.zeros((1, HIDDEN), jnp.float32)
    return p


def bert_layer_reference(x, mask_add, p):
    """Pure-JAX f32 mirror of the PyTorch BertLayer forward (eval mode)."""
    B, S, H = x.shape

    def lin(a, w, b):
        return jnp.einsum("bsh,hf->bsf", a, w) + b

    def heads(a):
        return a.reshape(B, S, NUM_HEADS, HEAD_DIM).transpose(0, 2, 1, 3)

    q = heads(lin(x, p["wq"], p["bq"]))
    k = heads(lin(x, p["wk"], p["bk"]))
    v = heads(lin(x, p["wv"], p["bv"]))
    scores = jnp.einsum("bhqd,bhkd->bhqk", q, k) / math.sqrt(HEAD_DIM)
    scores = scores + mask_add[:, None]                       # (B,1,1,S)
    probs = jax.nn.softmax(scores, axis=-1)
    ctx = jnp.einsum("bhqk,bhkd->bhqd", probs, v).transpose(0, 2, 1, 3).reshape(B, S, H)

    attn = lin(ctx, p["wao"], p["bao"])
    attn = _layernorm(attn + x, p["ln1g"], p["ln1b"], LN_EPS)
    inter = _gelu_new(lin(attn, p["wi"], p["bi"]))
    out = lin(inter, p["wo"], p["bo"])
    return _layernorm(out + attn, p["ln2g"], p["ln2b"], LN_EPS)


if __name__ == "__main__":
    key = jax.random.PRNGKey(0)
    k_x, k_p = jax.random.split(key)

    x = jax.random.normal(k_x, (BATCH, SEQ, HIDDEN), jnp.float32)

    # padding-style attention mask: batch 0 attends to all 8 tokens, batch 1 to 6
    lengths = jnp.array([SEQ, SEQ - 2])
    keep = (jnp.arange(SEQ)[None, :] < lengths[:, None]).astype(jnp.float32)  # (B, S)
    mask_add = ((1.0 - keep) * -10000.0)[:, None, :]                          # (B, 1, S)

    params = init_params(k_p)

    out = bert_layer_forward(x, mask_add, params)
    out = jax.block_until_ready(out)

    ref = bert_layer_reference(x, mask_add, params)
    # Tolerance accounts for bf16 MXU operands (f32 accumulation) and the EUP
    # approximate reciprocal in the softmax denominator; the reference is pure f32.
    np.testing.assert_allclose(np.asarray(out), np.asarray(ref), rtol=2e-2, atol=2e-2)

    print("KERNEL_OK")
</pallas_src>

<mosaic_0001>
module attributes {stable_mosaic.version = 11 : i64} {
  func.func @bert_layer_kernel(%arg0: memref<16x32xf32, #tpu.memory_space<vmem>>, %arg1: memref<1x16x16xf32, #tpu.memory_space<vmem>>, %arg2: memref<32x96xbf16, #tpu.memory_space<vmem>>, %arg3: memref<1x96xf32, #tpu.memory_space<vmem>>, %arg4: memref<32x32xbf16, #tpu.memory_space<vmem>>, %arg5: memref<1x32xf32, #tpu.memory_space<vmem>>, %arg6: memref<1x32xf32, #tpu.memory_space<vmem>>, %arg7: memref<1x32xf32, #tpu.memory_space<vmem>>, %arg8: memref<32x64xbf16, #tpu.memory_space<vmem>>, %arg9: memref<1x64xf32, #tpu.memory_space<vmem>>, %arg10: memref<64x32xbf16, #tpu.memory_space<vmem>>, %arg11: memref<1x32xf32, #tpu.memory_space<vmem>>, %arg12: memref<1x32xf32, #tpu.memory_space<vmem>>, %arg13: memref<1x32xf32, #tpu.memory_space<vmem>>, %arg14: memref<16x32xf32, #tpu.memory_space<vmem>>) attributes {dimension_semantics = [], scalar_prefetch = 0 : i64, scratch_operands = 0 : i64, tpu.core_type = #tpu.core_type<tc>} {
    %c0 = arith.constant 0 : index
    %c0_0 = arith.constant 0 : index
    %0 = vector.load %arg0[%c0, %c0_0] : memref<16x32xf32, #tpu.memory_space<vmem>>, vector<16x32xf32>
    %1 = arith.truncf %0 : vector<16x32xf32> to vector<16x32xbf16>
    %c0_1 = arith.constant 0 : index
    %c0_2 = arith.constant 0 : index
    %2 = vector.load %arg2[%c0_1, %c0_2] : memref<32x96xbf16, #tpu.memory_space<vmem>>, vector<32x96xbf16>
    %cst = arith.constant dense<0.000000e+00> : vector<16x96xf32>
    %3 = tpu.matmul %1, %2, %cst {dimension_numbers = #tpu.dot_dimension_numbers<[1], [0], [0], [1], [0, 0, 1, 1], [], []>} : vector<16x32xbf16>, vector<32x96xbf16>, vector<16x96xf32> -> vector<16x96xf32>
    %c0_3 = arith.constant 0 : index
    %c0_4 = arith.constant 0 : index
    %4 = vector.load %arg3[%c0_3, %c0_4] : memref<1x96xf32, #tpu.memory_space<vmem>>, vector<1x96xf32>
    %5 = vector.broadcast %4 : vector<1x96xf32> to vector<16x96xf32>
    %6 = arith.addf %3, %5 : vector<16x96xf32>
    %7 = vector.extract_strided_slice %6 {offsets = [0, 0], sizes = [16, 8], strides = [1, 1]} : vector<16x96xf32> to vector<16x8xf32>
    %8 = vector.shape_cast %7 : vector<16x8xf32> to vector<1x16x8xf32>
    %9 = vector.extract_strided_slice %6 {offsets = [0, 8], sizes = [16, 8], strides = [1, 1]} : vector<16x96xf32> to vector<16x8xf32>
    %10 = vector.shape_cast %9 : vector<16x8xf32> to vector<1x16x8xf32>
    %11 = vector.extract_strided_slice %6 {offsets = [0, 16], sizes = [16, 8], strides = [1, 1]} : vector<16x96xf32> to vector<16x8xf32>
    %12 = vector.shape_cast %11 : vector<16x8xf32> to vector<1x16x8xf32>
    %13 = vector.extract_strided_slice %6 {offsets = [0, 24], sizes = [16, 8], strides = [1, 1]} : vector<16x96xf32> to vector<16x8xf32>
    %14 = vector.shape_cast %13 : vector<16x8xf32> to vector<1x16x8xf32>
    %15 = tpu.concatenate %8, %10, %12, %14 in 0 : vector<1x16x8xf32>, vector<1x16x8xf32>, vector<1x16x8xf32>, vector<1x16x8xf32> -> vector<4x16x8xf32>
    %16 = arith.truncf %15 : vector<4x16x8xf32> to vector<4x16x8xbf16>
    %17 = vector.extract_strided_slice %6 {offsets = [0, 32], sizes = [16, 8], strides = [1, 1]} : vector<16x96xf32> to vector<16x8xf32>
    %18 = vector.shape_cast %17 : vector<16x8xf32> to vector<1x16x8xf32>
    %19 = vector.extract_strided_slice %6 {offsets = [0, 40], sizes = [16, 8], strides = [1, 1]} : vector<16x96xf32> to vector<16x8xf32>
    %20 = vector.shape_cast %19 : vector<16x8xf32> to vector<1x16x8xf32>
    %21 = vector.extract_strided_slice %6 {offsets = [0, 48], sizes = [16, 8], strides = [1, 1]} : vector<16x96xf32> to vector<16x8xf32>
    %22 = vector.shape_cast %21 : vector<16x8xf32> to vector<1x16x8xf32>
    %23 = vector.extract_strided_slice %6 {offsets = [0, 56], sizes = [16, 8], strides = [1, 1]} : vector<16x96xf32> to vector<16x8xf32>
    %24 = vector.shape_cast %23 : vector<16x8xf32> to vector<1x16x8xf32>
    %25 = tpu.concatenate %18, %20, %22, %24 in 0 : vector<1x16x8xf32>, vector<1x16x8xf32>, vector<1x16x8xf32>, vector<1x16x8xf32> -> vector<4x16x8xf32>
    %26 = arith.truncf %25 : vector<4x16x8xf32> to vector<4x16x8xbf16>
    %27 = vector.extract_strided_slice %6 {offsets = [0, 64], sizes = [16, 8], strides = [1, 1]} : vector<16x96xf32> to vector<16x8xf32>
    %28 = vector.shape_cast %27 : vector<16x8xf32> to vector<1x16x8xf32>
    %29 = vector.extract_strided_slice %6 {offsets = [0, 72], sizes = [16, 8], strides = [1, 1]} : vector<16x96xf32> to vector<16x8xf32>
    %30 = vector.shape_cast %29 : vector<16x8xf32> to vector<1x16x8xf32>
    %31 = vector.extract_strided_slice %6 {offsets = [0, 80], sizes = [16, 8], strides = [1, 1]} : vector<16x96xf32> to vector<16x8xf32>
    %32 = vector.shape_cast %31 : vector<16x8xf32> to vector<1x16x8xf32>
    %33 = vector.extract_strided_slice %6 {offsets = [0, 88], sizes = [16, 8], strides = [1, 1]} : vector<16x96xf32> to vector<16x8xf32>
    %34 = vector.shape_cast %33 : vector<16x8xf32> to vector<1x16x8xf32>
    %35 = tpu.concatenate %28, %30, %32, %34 in 0 : vector<1x16x8xf32>, vector<1x16x8xf32>, vector<1x16x8xf32>, vector<1x16x8xf32> -> vector<4x16x8xf32>
    %36 = arith.truncf %35 : vector<4x16x8xf32> to vector<4x16x8xbf16>
    %cst_5 = arith.constant dense<0.000000e+00> : vector<4x16x16xf32>
    %37 = tpu.matmul %16, %26, %cst_5 {dimension_numbers = #tpu.dot_dimension_numbers<[2], [2], [1], [1], [0, 0, 0, 1, 1, 1], [0], [0]>} : vector<4x16x8xbf16>, vector<4x16x8xbf16>, vector<4x16x16xf32> -> vector<4x16x16xf32>
    %cst_6 = arith.constant 0.353553385 : f32
    %38 = vector.broadcast %cst_6 : f32 to vector<4x16x16xf32>
    %39 = arith.mulf %37, %38 : vector<4x16x16xf32>
    %c0_7 = arith.constant 0 : index
    %c0_8 = arith.constant 0 : index
    %c0_9 = arith.constant 0 : index
    %40 = vector.load %arg1[%c0_7, %c0_8, %c0_9] : memref<1x16x16xf32, #tpu.memory_space<vmem>>, vector<1x16x16xf32>
    %41 = vector.broadcast %40 : vector<1x16x16xf32> to vector<4x16x16xf32>
    %42 = arith.addf %39, %41 : vector<4x16x16xf32>
    %cst_10 = arith.constant dense<0xFF800000> : vector<4x16xf32>
    %43 = vector.multi_reduction <maximumf>, %42, %cst_10 [2] : vector<4x16x16xf32> to vector<4x16xf32>
    %44 = vector.shape_cast %43 : vector<4x16xf32> to vector<4x16x1xf32>
    %45 = vector.broadcast %44 : vector<4x16x1xf32> to vector<4x16x16xf32>
    %46 = arith.subf %42, %45 : vector<4x16x16xf32>
    %47 = math.exp %46 : vector<4x16x16xf32>
    %cst_11 = arith.constant dense<0.000000e+00> : vector<4x16xf32>
    %48 = vector.multi_reduction <add>, %47, %cst_11 [2] : vector<4x16x16xf32> to vector<4x16xf32>
    %49 = vector.shape_cast %48 : vector<4x16xf32> to vector<4x16x1xf32>
    %50 = tpu.reciprocal %49 {approx = true} : vector<4x16x1xf32> -> vector<4x16x1xf32>
    %51 = vector.broadcast %50 : vector<4x16x1xf32> to vector<4x16x16xf32>
    %52 = arith.mulf %47, %51 : vector<4x16x16xf32>
    %53 = arith.truncf %52 : vector<4x16x16xf32> to vector<4x16x16xbf16>
    %cst_12 = arith.constant dense<0.000000e+00> : vector<4x16x8xf32>
    %54 = tpu.matmul %53, %36, %cst_12 {dimension_numbers = #tpu.dot_dimension_numbers<[2], [1], [1], [2], [0, 0, 0, 1, 1, 2], [0], [0]>} : vector<4x16x16xbf16>, vector<4x16x8xbf16>, vector<4x16x8xf32> -> vector<4x16x8xf32>
    %55 = vector.extract_strided_slice %54 {offsets = [0, 0, 0], sizes = [1, 16, 8], strides = [1, 1, 1]} : vector<4x16x8xf32> to vector<1x16x8xf32>
    %56 = vector.shape_cast %55 : vector<1x16x8xf32> to vector<16x8xf32>
    %57 = vector.extract_strided_slice %54 {offsets = [1, 0, 0], sizes = [1, 16, 8], strides = [1, 1, 1]} : vector<4x16x8xf32> to vector<1x16x8xf32>
    %58 = vector.shape_cast %57 : vector<1x16x8xf32> to vector<16x8xf32>
    %59 = vector.extract_strided_slice %54 {offsets = [2, 0, 0], sizes = [1, 16, 8], strides = [1, 1, 1]} : vector<4x16x8xf32> to vector<1x16x8xf32>
    %60 = vector.shape_cast %59 : vector<1x16x8xf32> to vector<16x8xf32>
    %61 = vector.extract_strided_slice %54 {offsets = [3, 0, 0], sizes = [1, 16, 8], strides = [1, 1, 1]} : vector<4x16x8xf32> to vector<1x16x8xf32>
    %62 = vector.shape_cast %61 : vector<1x16x8xf32> to vector<16x8xf32>
    %63 = tpu.concatenate %56, %58, %60, %62 in 1 : vector<16x8xf32>, vector<16x8xf32>, vector<16x8xf32>, vector<16x8xf32> -> vector<16x32xf32>
    %64 = arith.truncf %63 : vector<16x32xf32> to vector<16x32xbf16>
    %c0_13 = arith.constant 0 : index
    %c0_14 = arith.constant 0 : index
    %65 = vector.load %arg4[%c0_13, %c0_14] : memref<32x32xbf16, #tpu.memory_space<vmem>>, vector<32x32xbf16>
    %cst_15 = arith.constant dense<0.000000e+00> : vector<16x32xf32>
    %66 = tpu.matmul %64, %65, %cst_15 {dimension_numbers = #tpu.dot_dimension_numbers<[1], [0], [0], [1], [0, 0, 1, 1], [], []>} : vector<16x32xbf16>, vector<32x32xbf16>, vector<16x32xf32> -> vector<16x32xf32>
    %c0_16 = arith.constant 0 : index
    %c0_17 = arith.constant 0 : index
    %67 = vector.load %arg5[%c0_16, %c0_17] : memref<1x32xf32, #tpu.memory_space<vmem>>, vector<1x32xf32>
    %68 = vector.broadcast %67 : vector<1x32xf32> to vector<16x32xf32>
    %69 = arith.addf %66, %68 : vector<16x32xf32>
    %70 = arith.addf %69, %0 : vector<16x32xf32>
    %c0_18 = arith.constant 0 : index
    %c0_19 = arith.constant 0 : index
    %71 = vector.load %arg6[%c0_18, %c0_19] : memref<1x32xf32, #tpu.memory_space<vmem>>, vector<1x32xf32>
    %c0_20 = arith.constant 0 : index
    %c0_21 = arith.constant 0 : index
    %72 = vector.load %arg7[%c0_20, %c0_21] : memref<1x32xf32, #tpu.memory_space<vmem>>, vector<1x32xf32>
    %cst_22 = arith.constant dense<0.000000e+00> : vector<16xf32>
    %73 = vector.multi_reduction <add>, %70, %cst_22 [1] : vector<16x32xf32> to vector<16xf32>
    %74 = vector.shape_cast %73 : vector<16xf32> to vector<16x1xf32>
    %cst_23 = arith.constant 3.200000e+01 : f32
    %75 = vector.broadcast %cst_23 : f32 to vector<16x1xf32>
    %76 = arith.divf %74, %75 : vector<16x1xf32>
    %77 = vector.broadcast %76 : vector<16x1xf32> to vector<16x32xf32>
    %78 = arith.subf %70, %77 : vector<16x32xf32>
    %79 = arith.mulf %78, %78 : vector<16x32xf32>
    %cst_24 = arith.constant dense<0.000000e+00> : vector<16xf32>
    %80 = vector.multi_reduction <add>, %79, %cst_24 [1] : vector<16x32xf32> to vector<16xf32>
    %81 = vector.shape_cast %80 : vector<16xf32> to vector<16x1xf32>
    %cst_25 = arith.constant 3.200000e+01 : f32
    %82 = vector.broadcast %cst_25 : f32 to vector<16x1xf32>
    %83 = arith.divf %81, %82 : vector<16x1xf32>
    %cst_26 = arith.constant 9.99999996E-13 : f32
    %84 = vector.broadcast %cst_26 : f32 to vector<16x1xf32>
    %85 = arith.addf %83, %84 : vector<16x1xf32>
    %86 = math.rsqrt %85 : vector<16x1xf32>
    %87 = vector.broadcast %86 : vector<16x1xf32> to vector<16x32xf32>
    %88 = arith.mulf %78, %87 : vector<16x32xf32>
    %89 = vector.broadcast %71 : vector<1x32xf32> to vector<16x32xf32>
    %90 = arith.mulf %88, %89 : vector<16x32xf32>
    %91 = vector.broadcast %72 : vector<1x32xf32> to vector<16x32xf32>
    %92 = arith.addf %90, %91 : vector<16x32xf32>
    %93 = arith.truncf %92 : vector<16x32xf32> to vector<16x32xbf16>
    %c0_27 = arith.constant 0 : index
    %c0_28 = arith.constant 0 : index
    %94 = vector.load %arg8[%c0_27, %c0_28] : memref<32x64xbf16, #tpu.memory_space<vmem>>, vector<32x64xbf16>
    %cst_29 = arith.constant dense<0.000000e+00> : vector<16x64xf32>
    %95 = tpu.matmul %93, %94, %cst_29 {dimension_numbers = #tpu.dot_dimension_numbers<[1], [0], [0], [1], [0, 0, 1, 1], [], []>} : vector<16x32xbf16>, vector<32x64xbf16>, vector<16x64xf32> -> vector<16x64xf32>
    %c0_30 = arith.constant 0 : index
    %c0_31 = arith.constant 0 : index
    %96 = vector.load %arg9[%c0_30, %c0_31] : memref<1x64xf32, #tpu.memory_space<vmem>>, vector<1x64xf32>
    %97 = vector.broadcast %96 : vector<1x64xf32> to vector<16x64xf32>
    %98 = arith.addf %95, %97 : vector<16x64xf32>
    %cst_32 = arith.constant 5.000000e-01 : f32
    %99 = vector.broadcast %cst_32 : f32 to vector<16x64xf32>
    %100 = arith.mulf %99, %98 : vector<16x64xf32>
    %cst_33 = arith.constant 4.471500e-02 : f32
    %101 = vector.broadcast %cst_33 : f32 to vector<16x64xf32>
    %102 = arith.mulf %101, %98 : vector<16x64xf32>
    %103 = arith.mulf %102, %98 : vector<16x64xf32>
    %104 = arith.mulf %103, %98 : vector<16x64xf32>
    %105 = arith.addf %98, %104 : vector<16x64xf32>
    %cst_34 = arith.constant 0.797884583 : f32
    %106 = vector.broadcast %cst_34 : f32 to vector<16x64xf32>
    %107 = arith.mulf %106, %105 : vector<16x64xf32>
    %108 = math.tanh %107 : vector<16x64xf32>
    %cst_35 = arith.constant 1.000000e+00 : f32
    %109 = vector.broadcast %cst_35 : f32 to vector<16x64xf32>
    %110 = arith.addf %109, %108 : vector<16x64xf32>
    %111 = arith.mulf %100, %110 : vector<16x64xf32>
    %112 = arith.truncf %111 : vector<16x64xf32> to vector<16x64xbf16>
    %c0_36 = arith.constant 0 : index
    %c0_37 = arith.constant 0 : index
    %113 = vector.load %arg10[%c0_36, %c0_37] : memref<64x32xbf16, #tpu.memory_space<vmem>>, vector<64x32xbf16>
    %cst_38 = arith.constant dense<0.000000e+00> : vector<16x32xf32>
    %114 = tpu.matmul %112, %113, %cst_38 {dimension_numbers = #tpu.dot_dimension_numbers<[1], [0], [0], [1], [0, 0, 1, 1], [], []>} : vector<16x64xbf16>, vector<64x32xbf16>, vector<16x32xf32> -> vector<16x32xf32>
    %c0_39 = arith.constant 0 : index
    %c0_40 = arith.constant 0 : index
    %115 = vector.load %arg11[%c0_39, %c0_40] : memref<1x32xf32, #tpu.memory_space<vmem>>, vector<1x32xf32>
    %116 = vector.broadcast %115 : vector<1x32xf32> to vector<16x32xf32>
    %117 = arith.addf %114, %116 : vector<16x32xf32>
    %118 = arith.addf %117, %92 : vector<16x32xf32>
    %c0_41 = arith.constant 0 : index
    %c0_42 = arith.constant 0 : index
    %119 = vector.load %arg12[%c0_41, %c0_42] : memref<1x32xf32, #tpu.memory_space<vmem>>, vector<1x32xf32>
    %c0_43 = arith.constant 0 : index
    %c0_44 = arith.constant 0 : index
    %120 = vector.load %arg13[%c0_43, %c0_44] : memref<1x32xf32, #tpu.memory_space<vmem>>, vector<1x32xf32>
    %cst_45 = arith.constant dense<0.000000e+00> : vector<16xf32>
    %121 = vector.multi_reduction <add>, %118, %cst_45 [1] : vector<16x32xf32> to vector<16xf32>
    %122 = vector.shape_cast %121 : vector<16xf32> to vector<16x1xf32>
    %cst_46 = arith.constant 3.200000e+01 : f32
    %123 = vector.broadcast %cst_46 : f32 to vector<16x1xf32>
    %124 = arith.divf %122, %123 : vector<16x1xf32>
    %125 = vector.broadcast %124 : vector<16x1xf32> to vector<16x32xf32>
    %126 = arith.subf %118, %125 : vector<16x32xf32>
    %127 = arith.mulf %126, %126 : vector<16x32xf32>
    %cst_47 = arith.constant dense<0.000000e+00> : vector<16xf32>
    %128 = vector.multi_reduction <add>, %127, %cst_47 [1] : vector<16x32xf32> to vector<16xf32>
    %129 = vector.shape_cast %128 : vector<16xf32> to vector<16x1xf32>
    %cst_48 = arith.constant 3.200000e+01 : f32
    %130 = vector.broadcast %cst_48 : f32 to vector<16x1xf32>
    %131 = arith.divf %129, %130 : vector<16x1xf32>
    %cst_49 = arith.constant 9.99999996E-13 : f32
    %132 = vector.broadcast %cst_49 : f32 to vector<16x1xf32>
    %133 = arith.addf %131, %132 : vector<16x1xf32>
    %134 = math.rsqrt %133 : vector<16x1xf32>
    %135 = vector.broadcast %134 : vector<16x1xf32> to vector<16x32xf32>
    %136 = arith.mulf %126, %135 : vector<16x32xf32>
    %137 = vector.broadcast %119 : vector<1x32xf32> to vector<16x32xf32>
    %138 = arith.mulf %136, %137 : vector<16x32xf32>
    %139 = vector.broadcast %120 : vector<1x32xf32> to vector<16x32xf32>
    %140 = arith.addf %138, %139 : vector<16x32xf32>
    %c0_50 = arith.constant 0 : index
    %c0_51 = arith.constant 0 : index
    %141 = vector.load %arg14[%c0_50, %c0_51] : memref<16x32xf32, #tpu.memory_space<vmem>>, vector<16x32xf32>
    tpu.vector_store %arg14[%c0_50, %c0_51], %140 {strides = array<i32>} : memref<16x32xf32, #tpu.memory_space<vmem>>, vector<16x32xf32>,
    return
  }
}

</mosaic_0001>

<llo_original>
// kernel: tpu_custom_call.1
$region0: #{tpu_custom_call.1}
  #allocation0 [shape = 'u32[]', space=smem, size = 0x4, offset = 0x4, fixed_abs, tag = 'smem constant byte address 0x4 - core index']
  #allocation1 [shape = 'u32[144,128]{1,0:T(1,128)}', space=vmem, size = 0x12000, scoped, tag = 'internal scratch']
  %s0 = inlined_call_operand.vmem [shape: f32[16,32], index: 0, kind: input, shape index: {}]
  %s1 = inlined_call_operand.vmem [shape: f32[1,16,16], index: 1, kind: input, shape index: {}]
  %s2 = inlined_call_operand.vmem [shape: bf16[32,96], index: 2, kind: input, shape index: {}]
  %s3 = inlined_call_operand.vmem [shape: f32[1,96], index: 3, kind: input, shape index: {}]
  %s4 = inlined_call_operand.hbm [shape: bf16[32,32], index: 4, kind: input, shape index: {}]
  %s5 = inlined_call_operand.vmem [shape: f32[1,32], index: 5, kind: input, shape index: {}]
  %s6 = inlined_call_operand.vmem [shape: f32[1,32], index: 6, kind: input, shape index: {}]
  %s7 = inlined_call_operand.vmem [shape: f32[1,32], index: 7, kind: input, shape index: {}]
  %s8 = inlined_call_operand.hbm [shape: bf16[32,64], index: 8, kind: input, shape index: {}]
  %s9 = inlined_call_operand.vmem [shape: f32[1,64], index: 9, kind: input, shape index: {}]
  %s10 = inlined_call_operand.vmem [shape: bf16[64,32], index: 10, kind: input, shape index: {}]
  %s11 = inlined_call_operand.vmem [shape: f32[1,32], index: 11, kind: input, shape index: {}]
  %s12 = inlined_call_operand.vmem [shape: f32[1,32], index: 12, kind: input, shape index: {}]
  %s13 = inlined_call_operand.vmem [shape: f32[1,32], index: 13, kind: input, shape index: {}]
  %s14 = inlined_call_operand.hbm [shape: f32[16,32], index: 14, kind: output, shape index: {}]
  %s15 = sld [smem:[#allocation0]]
  $region74: #{tpu_custom_call.1} parent=0
    _
  %s17 = ssub.s32 1, %s15
  %s18 = scalar_select 0, %s17, %s15
  $region1: #{tpu_custom_call.1} parent=0
    #allocation2 [shape = 'u8[8192]{0}', space=vmem, size = 0x2000, scoped, tag = 'input window, operand 4, single buffered']
    #allocation3 [shape = 's32[1]{0}', space=sflag, size = 0x4, scoped, tag = 'scoped memory for tpu_custom_call.1']
    #allocation4 [shape = 's32[1]{0}', space=sflag, size = 0x4, scoped, tag = 'scoped memory for tpu_custom_call.1']
    #allocation5 [shape = 'u8[8192]{0}', space=vmem, size = 0x2000, scoped, tag = 'input window, operand 8, single buffered']
    #allocation6 [shape = 's32[1]{0}', space=sflag, size = 0x4, scoped, tag = 'scoped memory for tpu_custom_call.1']
    #allocation7 [shape = 'u8[8192]{0}', space=vmem, size = 0x2000, scoped, tag = 'output window, operand 0, single buffered']
    %19 = vsyncpa [#allocation3], 0
    %20 = vsyncpa [#allocation6], 0
    %21 = vsyncpa [#allocation4], 0
    // Predicated region
    $region2: #{tpu_custom_call.1} parent=1 // pred_check
      _
    $region3: #{tpu_custom_call.1} parent=1 // pred_check_branch
      %23 = sbr.rel (0) target = $region5
    $region4: #{tpu_custom_call.1} parent=1 // pred_region
      _
    $region5: #{tpu_custom_call.1} parent=1 // pred_fallthru
      _
    // Predicated region
    $region6: #{tpu_custom_call.1} parent=1 // pred_check
      _
    $region7: #{tpu_custom_call.1} parent=1 // pred_check_branch
      %25 = sbr.rel (0) target = $region9
    $region8: #{tpu_custom_call.1} parent=1 // pred_region
      _
    $region9: #{tpu_custom_call.1} parent=1 // pred_fallthru
      _
    // Predicated region
    $region10: #{tpu_custom_call.1} parent=1 // pred_check
      _
    $region11: #{tpu_custom_call.1} parent=1 // pred_check_branch
      %27 = sbr.rel (0) target = $region13
    $region12: #{tpu_custom_call.1} parent=1 // pred_region
      _
    $region13: #{tpu_custom_call.1} parent=1 // pred_fallthru
      _
    // Predicated region
    $region14: #{tpu_custom_call.1} parent=1 // pred_check
      _
    $region15: #{tpu_custom_call.1} parent=1 // pred_check_branch
      %29 = sbr.rel (0) target = $region17
    $region16: #{tpu_custom_call.1} parent=1 // pred_region
      _
    $region17: #{tpu_custom_call.1} parent=1 // pred_fallthru
      _
    // Predicated region
    $region18: #{tpu_custom_call.1} parent=1 // pred_check
      _
    $region19: #{tpu_custom_call.1} parent=1 // pred_check_branch
      %31 = sbr.rel (0) target = $region21
    $region20: #{tpu_custom_call.1} parent=1 // pred_region
      %s33 = ssub.s32 256, 256
      %34 = vsyncadd [#allocation3], %s33
      %s35 = sshll.u32 [#allocation2], 4
      %s36 = int_to_ptr.vmem [resolvable:$true] %s35
      %41 = dma.hbm_to_vmem [thread:$0]  %s4, 256, %s36, [#allocation3], 64, 64, 4
    $region21: #{tpu_custom_call.1} parent=1 // pred_fallthru
      _
    // Predicated region
    $region22: #{tpu_custom_call.1} parent=1 // pred_check
      _
    $region23: #{tpu_custom_call.1} parent=1 // pred_check_branch
      %43 = sbr.rel (0) target = $region25
    $region24: #{tpu_custom_call.1} parent=1 // pred_region
      _
    $region25: #{tpu_custom_call.1} parent=1 // pred_fallthru
      _
    // Predicated region
    $region26: #{tpu_custom_call.1} parent=1 // pred_check
      _
    $region27: #{tpu_custom_call.1} parent=1 // pred_check_branch
      %45 = sbr.rel (0) target = $region29
    $region28: #{tpu_custom_call.1} parent=1 // pred_region
      _
    $region29: #{tpu_custom_call.1} parent=1 // pred_fallthru
      _
    // Predicated region
    $region30: #{tpu_custom_call.1} parent=1 // pred_check
      _
    $region31: #{tpu_custom_call.1} parent=1 // pred_check_branch
      %47 = sbr.rel (0) target = $region33
    $region32: #{tpu_custom_call.1} parent=1 // pred_region
      _
    $region33: #{tpu_custom_call.1} parent=1 // pred_fallthru
      _
    // Predicated region
    $region34: #{tpu_custom_call.1} parent=1 // pred_check
      _
    $region35: #{tpu_custom_call.1} parent=1 // pred_check_branch
      %49 = sbr.rel (0) target = $region37
    $region36: #{tpu_custom_call.1} parent=1 // pred_region
      %s51 = ssub.s32 256, 256
      %52 = vsyncadd [#allocation6], %s51
      %s53 = sshll.u32 [#allocation5], 4
      %s54 = int_to_ptr.vmem [resolvable:$true] %s53
      %59 = dma.hbm_to_vmem [thread:$0]  %s8, 256, %s54, [#allocation6], 64, 64, 4
    $region37: #{tpu_custom_call.1} parent=1 // pred_fallthru
      _
    // Predicated region
    $region38: #{tpu_custom_call.1} parent=1 // pred_check
      _
    $region39: #{tpu_custom_call.1} parent=1 // pred_check_branch
      %61 = sbr.rel (0) target = $region41
    $region40: #{tpu_custom_call.1} parent=1 // pred_region
      _
    $region41: #{tpu_custom_call.1} parent=1 // pred_fallthru
      _
    // Predicated region
    $region42: #{tpu_custom_call.1} parent=1 // pred_check
      _
    $region43: #{tpu_custom_call.1} parent=1 // pred_check_branch
      %63 = sbr.rel (0) target = $region45
    $region44: #{tpu_custom_call.1} parent=1 // pred_region
      _
    $region45: #{tpu_custom_call.1} parent=1 // pred_fallthru
      _
    // Predicated region
    $region46: #{tpu_custom_call.1} parent=1 // pred_check
      _
    $region47: #{tpu_custom_call.1} parent=1 // pred_check_branch
      %65 = sbr.rel (0) target = $region49
    $region48: #{tpu_custom_call.1} parent=1 // pred_region
      _
    $region49: #{tpu_custom_call.1} parent=1 // pred_fallthru
      _
    // Predicated region
    $region50: #{tpu_custom_call.1} parent=1 // pred_check
      _
    $region51: #{tpu_custom_call.1} parent=1 // pred_check_branch
      %67 = sbr.rel (0) target = $region53
    $region52: #{tpu_custom_call.1} parent=1 // pred_region
      _
    $region53: #{tpu_custom_call.1} parent=1 // pred_fallthru
      _
    // Predicated region
    $region54: #{tpu_custom_call.1} parent=1 // pred_check
      _
    $region55: #{tpu_custom_call.1} parent=1 // pred_check_branch
      %69 = sbr.rel (0) target = $region57
    $region56: #{tpu_custom_call.1} parent=1 // pred_region
      _
    $region57: #{tpu_custom_call.1} parent=1 // pred_fallthru
      _
    // Predicated region
    $region58: #{tpu_custom_call.1} parent=1 // pred_check
      _
    $region59: #{tpu_custom_call.1} parent=1 // pred_check_branch
      %71 = sbr.rel (0) target = $region61
    $region60: #{tpu_custom_call.1} parent=1 // pred_region
      %72 = dma.done [#allocation3], 256
    $region61: #{tpu_custom_call.1} parent=1 // pred_fallthru
      _
    // Predicated region
    $region62: #{tpu_custom_call.1} parent=1 // pred_check
      _
    $region63: #{tpu_custom_call.1} parent=1 // pred_check_branch
      %74 = sbr.rel (0) target = $region65
    $region64: #{tpu_custom_call.1} parent=1 // pred_region
      %75 = dma.done [#allocation6], 256
    $region65: #{tpu_custom_call.1} parent=1 // pred_fallthru
      _
    %v77 = vld [vmem:[%s0] sm:$0xff]
    %v78 = vld [vmem:[%s0 + $0x8] sm:$0xff]
    %v79 = vpack.c.bf16 %v78, %v77
    %v80 = vld [vmem:[%s2] sm:$0xf]
    %v81 = vld [vmem:[%s2 + $0x4] sm:$0xf]
    %v82 = vld [vmem:[%s2 + $0x8] sm:$0xf]
    %v83 = vld [vmem:[%s2 + $0xc] sm:$0xf]
    %v84 = vld [vmem:[%s3] sm:$0x1]
    %v86 = vlaneseq
    %v87 = vshrl.u32 %v86, 7
    %v88 = vsub.s32 0, %v87
    %v89 = vrot.slane %v84, %v88
    %v95 = vunpack.c.l.b16 %v80
    %v96 = vunpack.c.l.b16 %v81
    %v97 = vunpack.c.l.b16 %v82
    %v98 = vunpack.c.l.b16 %v83
    %v99 = vpack.c.b16 %v96, %v95
    %v100 = vpack.c.b16 %v98, %v97
    %vm103 = vcmask 261120
    %v105 = vsel %vm103, %v79, 0
    %107 = vmatprep.subr.bf16.mxu0 0
    %108 = vmatpush1.bf16.msra.mxu0 %v99
    %109 = vmatprep.subr.bf16.mxu0 0
    %110 = vmatpush1.bf16.msra.mxu0 %v100
    %111 = vmatprep.subr.bf16.mxu0 0
    %112 = vmatpush1.bf16.msra.mxu0 0
    %113 = vmatprep.subr.bf16.mxu0 0
    %114 = vmatpush1.bf16.msra.mxu0 0
    %115 = vmatprep.subr.bf16.mxu0 0
    %116 = vmatpush1.bf16.msra.mxu0 0
    %117 = vmatprep.subr.bf16.mxu0 0
    %118 = vmatpush1.bf16.msra.mxu0 0
    %119 = vmatprep.subr.bf16.mxu0 0
    %120 = vmatpush1.bf16.msra.mxu0 0
    %121 = vmatprep.subr.bf16.mxu0 0
    %122 = vmatpush1.bf16.msra.mxu0 0
    %123 = vmatprep.subr.bf16.mxu0 0
    %124 = vmatpush1.bf16.msra.mxu0 0
    %125 = vmatprep.subr.bf16.mxu0 0
    %126 = vmatpush1.bf16.msra.mxu0 0
    %127 = vmatprep.subr.bf16.mxu0 0
    %128 = vmatpush1.bf16.msra.mxu0 0
    %129 = vmatprep.subr.bf16.mxu0 0
    %130 = vmatpush1.bf16.msra.mxu0 0
    %131 = vmatprep.subr.bf16.mxu0 0
    %132 = vmatpush1.bf16.msra.mxu0 0
    %133 = vmatprep.subr.bf16.mxu0 0
    %134 = vmatpush1.bf16.msra.mxu0 0
    %135 = vmatprep.subr.bf16.mxu0 0
    %136 = vmatpush1.bf16.msra.mxu0 0
    %137 = vmatprep.subr.bf16.mxu0 0
    %138 = vmatpush1.bf16.msra.mxu0 0
    %139 = vmatprep.mubr.bf16.mxu0 0
    %140 = vmatmul.mubr.bf16.gmra.mrb[0].mxu0 %v105
    %v141 = vpop.f32.mrb[0].mxu0
    %v142 = vadd.f32 %v89, %v141
    %v143 = vpop.f32.mrb[0].mxu0
    %v144 = vpop.f32.mrb[0].mxu0
    %v145 = vadd.f32 %v89, %v144
    %v146 = vpop.f32.mrb[0].mxu0
    %147 = vdwg.mxu0
    %150 = vrot.lane.b32.xlu0 %v142, 120
    %v151 = vpop.permute.xlu0 %150
    %152 = vrot.lane.b32.xlu0 %v145, 120
    %v153 = vpop.permute.xlu0 %152
    %156 = vrot.lane.b32.xlu0 %v142, 112
    %v157 = vpop.permute.xlu0 %156
    %158 = vrot.lane.b32.xlu0 %v145, 112
    %v159 = vpop.permute.xlu0 %158
    %162 = vrot.lane.b32.xlu0 %v142, 104
    %v163 = vpop.permute.xlu0 %162
    %164 = vrot.lane.b32.xlu0 %v145, 104
    %v165 = vpop.permute.xlu0 %164
    %v168 = vpack.c.bf16 %v145, %v142
    %v169 = vpack.c.bf16 %v153, %v151
    %v170 = vpack.c.bf16 %v159, %v157
    %v171 = vpack.c.bf16 %v165, %v163
    %173 = vrot.lane.b32.xlu0 %v168, 96
    %v174 = vpop.permute.xlu0 %173
    %vm175 = vcmask 64512
    %v177 = vsel %vm175, %v168, 0
    %v180 = vsel %vm175, %v174, 0
    %182 = vmatprep.subr.bf16.mxu0 0
    %183 = vmatpush1.bf16.xpose.msra.mxu0 %v180
    %184 = vmatprep.subr.bf16.mxu0 0
    %185 = vmatpush1.bf16.xpose.msra.mxu0 0
    %186 = vmatprep.subr.bf16.mxu0 0
    %187 = vmatpush1.bf16.xpose.msra.mxu0 0
    %188 = vmatprep.subr.bf16.mxu0 0
    %189 = vmatpush1.bf16.xpose.msra.mxu0 0
    %190 = vmatprep.subr.bf16.mxu0 0
    %191 = vmatpush1.bf16.xpose.msra.mxu0 0
    %192 = vmatprep.subr.bf16.mxu0 0
    %193 = vmatpush1.bf16.xpose.msra.mxu0 0
    %194 = vmatprep.subr.bf16.mxu0 0
    %195 = vmatpush1.bf16.xpose.msra.mxu0 0
    %196 = vmatprep.subr.bf16.mxu0 0
    %197 = vmatpush1.bf16.xpose.msra.mxu0 0
    %198 = vmatprep.subr.bf16.mxu0 0
    %199 = vmatpush1.bf16.xpose.msra.mxu0 0
    %200 = vmatprep.subr.bf16.mxu0 0
    %201 = vmatpush1.bf16.xpose.msra.mxu0 0
    %202 = vmatprep.subr.bf16.mxu0 0
    %203 = vmatpush1.bf16.xpose.msra.mxu0 0
    %204 = vmatprep.subr.bf16.mxu0 0
    %205 = vmatpush1.bf16.xpose.msra.mxu0 0
    %206 = vmatprep.subr.bf16.mxu0 0
    %207 = vmatpush1.bf16.xpose.msra.mxu0 0
    %208 = vmatprep.subr.bf16.mxu0 0
    %209 = vmatpush1.bf16.xpose.msra.mxu0 0
    %210 = vmatprep.subr.bf16.mxu0 0
    %211 = vmatpush1.bf16.xpose.msra.mxu0 0
    %212 = vmatprep.subr.bf16.mxu0 0
    %213 = vmatpush1.bf16.xpose.msra.mxu0 0
    %214 = vmatprep.mubr.bf16.mxu0 0
    %215 = vmatmul.mubr.bf16.gmra.mrb[0].mxu0 %v177
    %v216 = vpop.f32.mrb[0].mxu0
    %v217 = vadd.f32 0.0, %v216
    %v218 = vpop.f32.mrb[0].mxu0
    %v219 = vpop.f32.mrb[0].mxu0
    %v220 = vadd.f32 0.0, %v219
    %v221 = vpop.f32.mrb[0].mxu0
    %222 = vdwg.mxu0
    %224 = vrot.lane.b32.xlu0 %v169, 96
    %v225 = vpop.permute.xlu0 %224
    %v227 = vsel %vm175, %v169, 0
    %v230 = vsel %vm175, %v225, 0
    %232 = vmatprep.subr.bf16.mxu0 0
    %233 = vmatpush1.bf16.xpose.msra.mxu0 %v230
    %234 = vmatprep.subr.bf16.mxu0 0
    %235 = vmatpush1.bf16.xpose.msra.mxu0 0
    %236 = vmatprep.subr.bf16.mxu0 0
    %237 = vmatpush1.bf16.xpose.msra.mxu0 0
    %238 = vmatprep.subr.bf16.mxu0 0
    %239 = vmatpush1.bf16.xpose.msra.mxu0 0
    %240 = vmatprep.subr.bf16.mxu0 0
    %241 = vmatpush1.bf16.xpose.msra.mxu0 0
    %242 = vmatprep.subr.bf16.mxu0 0
    %243 = vmatpush1.bf16.xpose.msra.mxu0 0
    %244 = vmatprep.subr.bf16.mxu0 0
    %245 = vmatpush1.bf16.xpose.msra.mxu0 0
    %246 = vmatprep.subr.bf16.mxu0 0
    %247 = vmatpush1.bf16.xpose.msra.mxu0 0
    %248 = vmatprep.subr.bf16.mxu0 0
    %249 = vmatpush1.bf16.xpose.msra.mxu0 0
    %250 = vmatprep.subr.bf16.mxu0 0
    %251 = vmatpush1.bf16.xpose.msra.mxu0 0
    %252 = vmatprep.subr.bf16.mxu0 0
    %253 = vmatpush1.bf16.xpose.msra.mxu0 0
    %254 = vmatprep.subr.bf16.mxu0 0
    %255 = vmatpush1.bf16.xpose.msra.mxu0 0
    %256 = vmatprep.subr.bf16.mxu0 0
    %257 = vmatpush1.bf16.xpose.msra.mxu0 0
    %258 = vmatprep.subr.bf16.mxu0 0
    %259 = vmatpush1.bf16.xpose.msra.mxu0 0
    %260 = vmatprep.subr.bf16.mxu0 0
    %261 = vmatpush1.bf16.xpose.msra.mxu0 0
    %262 = vmatprep.subr.bf16.mxu0 0
    %263 = vmatpush1.bf16.xpose.msra.mxu0 0
    %264 = vmatprep.mubr.bf16.mxu0 0
    %265 = vmatmul.mubr.bf16.gmra.mrb[0].mxu0 %v227
    %v266 = vpop.f32.mrb[0].mxu0
    %v267 = vadd.f32 0.0, %v266
    %v268 = vpop.f32.mrb[0].mxu0
    %v269 = vpop.f32.mrb[0].mxu0
    %v270 = vadd.f32 0.0, %v269
    %v271 = vpop.f32.mrb[0].mxu0
    %272 = vdwg.mxu0
    %274 = vrot.lane.b32.xlu0 %v170, 96
    %v275 = vpop.permute.xlu0 %274
    %v277 = vsel %vm175, %v170, 0
    %v280 = vsel %vm175, %v275, 0
    %282 = vmatprep.subr.bf16.mxu0 0
    %283 = vmatpush1.bf16.xpose.msra.mxu0 %v280
    %284 = vmatprep.subr.bf16.mxu0 0
    %285 = vmatpush1.bf16.xpose.msra.mxu0 0
    %286 = vmatprep.subr.bf16.mxu0 0
    %287 = vmatpush1.bf16.xpose.msra.mxu0 0
    %288 = vmatprep.subr.bf16.mxu0 0
    %289 = vmatpush1.bf16.xpose.msra.mxu0 0
    %290 = vmatprep.subr.bf16.mxu0 0
    %291 = vmatpush1.bf16.xpose.msra.mxu0 0
    %292 = vmatprep.subr.bf16.mxu0 0
    %293 = vmatpush1.bf16.xpose.msra.mxu0 0
    %294 = vmatprep.subr.bf16.mxu0 0
    %295 = vmatpush1.bf16.xpose.msra.mxu0 0
    %296 = vmatprep.subr.bf16.mxu0 0
    %297 = vmatpush1.bf16.xpose.msra.mxu0 0
    %298 = vmatprep.subr.bf16.mxu0 0
    %299 = vmatpush1.bf16.xpose.msra.mxu0 0
    %300 = vmatprep.subr.bf16.mxu0 0
    %301 = vmatpush1.bf16.xpose.msra.mxu0 0
    %302 = vmatprep.subr.bf16.mxu0 0
    %303 = vmatpush1.bf16.xpose.msra.mxu0 0
    %304 = vmatprep.subr.bf16.mxu0 0
    %305 = vmatpush1.bf16.xpose.msra.mxu0 0
    %306 = vmatprep.subr.bf16.mxu0 0
    %307 = vmatpush1.bf16.xpose.msra.mxu0 0
    %308 = vmatprep.subr.bf16.mxu0 0
    %309 = vmatpush1.bf16.xpose.msra.mxu0 0
    %310 = vmatprep.subr.bf16.mxu0 0
    %311 = vmatpush1.bf16.xpose.msra.mxu0 0
    %312 = vmatprep.subr.bf16.mxu0 0
    %313 = vmatpush1.bf16.xpose.msra.mxu0 0
    %314 = vmatprep.mubr.bf16.mxu0 0
    %315 = vmatmul.mubr.bf16.gmra.mrb[0].mxu0 %v277
    %v316 = vpop.f32.mrb[0].mxu0
    %v317 = vadd.f32 0.0, %v316
    %v318 = vpop.f32.mrb[0].mxu0
    %v319 = vpop.f32.mrb[0].mxu0
    %v320 = vadd.f32 0.0, %v319
    %v321 = vpop.f32.mrb[0].mxu0
    %322 = vdwg.mxu0
    %324 = vrot.lane.b32.xlu0 %v171, 96
    %v325 = vpop.permute.xlu0 %324
    %v327 = vsel %vm175, %v171, 0
    %v330 = vsel %vm175, %v325, 0
    %332 = vmatprep.subr.bf16.mxu0 0
    %333 = vmatpush1.bf16.xpose.msra.mxu0 %v330
    %334 = vmatprep.subr.bf16.mxu0 0
    %335 = vmatpush1.bf16.xpose.msra.mxu0 0
    %336 = vmatprep.subr.bf16.mxu0 0
    %337 = vmatpush1.bf16.xpose.msra.mxu0 0
    %338 = vmatprep.subr.bf16.mxu0 0
    %339 = vmatpush1.bf16.xpose.msra.mxu0 0
    %340 = vmatprep.subr.bf16.mxu0 0
    %341 = vmatpush1.bf16.xpose.msra.mxu0 0
    %342 = vmatprep.subr.bf16.mxu0 0
    %343 = vmatpush1.bf16.xpose.msra.mxu0 0
    %344 = vmatprep.subr.bf16.mxu0 0
    %345 = vmatpush1.bf16.xpose.msra.mxu0 0
    %346 = vmatprep.subr.bf16.mxu0 0
    %347 = vmatpush1.bf16.xpose.msra.mxu0 0
    %348 = vmatprep.subr.bf16.mxu0 0
    %349 = vmatpush1.bf16.xpose.msra.mxu0 0
    %350 = vmatprep.subr.bf16.mxu0 0
    %351 = vmatpush1.bf16.xpose.msra.mxu0 0
    %352 = vmatprep.subr.bf16.mxu0 0
    %353 = vmatpush1.bf16.xpose.msra.mxu0 0
    %354 = vmatprep.subr.bf16.mxu0 0
    %355 = vmatpush1.bf16.xpose.msra.mxu0 0
    %356 = vmatprep.subr.bf16.mxu0 0
    %357 = vmatpush1.bf16.xpose.msra.mxu0 0
    %358 = vmatprep.subr.bf16.mxu0 0
    %359 = vmatpush1.bf16.xpose.msra.mxu0 0
    %360 = vmatprep.subr.bf16.mxu0 0
    %361 = vmatpush1.bf16.xpose.msra.mxu0 0
    %362 = vmatprep.subr.bf16.mxu0 0
    %363 = vmatpush1.bf16.xpose.msra.mxu0 0
    %364 = vmatprep.mubr.bf16.mxu0 0
    %365 = vmatmul.mubr.bf16.gmra.mrb[0].mxu0 %v327
    %v366 = vpop.f32.mrb[0].mxu0
    %v367 = vadd.f32 0.0, %v366
    %v368 = vpop.f32.mrb[0].mxu0
    %v369 = vpop.f32.mrb[0].mxu0
    %v370 = vadd.f32 0.0, %v369
    %v371 = vpop.f32.mrb[0].mxu0
    %372 = vdwg.mxu0
    %v373 = vmul.f32 %v217, 0.35355338
    %v374 = vmul.f32 %v220, 0.35355338
    %v375 = vmul.f32 %v267, 0.35355338
    %v376 = vmul.f32 %v270, 0.35355338
    %v377 = vmul.f32 %v317, 0.35355338
    %v378 = vmul.f32 %v320, 0.35355338
    %v379 = vmul.f32 %v367, 0.35355338
    %v380 = vmul.f32 %v370, 0.35355338
    %v381 = vld [vmem:[%s1] sm:$0xff]
    %v382 = vld [vmem:[%s1 + $0x8] sm:$0xff]
    %v383 = vadd.f32 %v373, %v381
    %v384 = vadd.f32 %v374, %v382
    %v385 = vadd.f32 %v375, %v381
    %v386 = vadd.f32 %v376, %v382
    %v387 = vadd.f32 %v377, %v381
    %v388 = vadd.f32 %v378, %v382
    %v389 = vadd.f32 %v379, %v381
    %v390 = vadd.f32 %v380, %v382
    %vm391 = vcmask 130048
    %v392 = vsel %vm391, %v383, -inf
    %393 = vmax.xlane.f32.xlu0 %v392
    %v394 = vpop.xlane.xlu0 %393
    %v395 = vsel %vm391, %v384, -inf
    %396 = vmax.xlane.f32.xlu0 %v395
    %v397 = vpop.xlane.xlu0 %396
    %v398 = vsel %vm391, %v385, -inf
    %399 = vmax.xlane.f32.xlu0 %v398
    %v400 = vpop.xlane.xlu0 %399
    %v401 = vsel %vm391, %v386, -inf
    %402 = vmax.xlane.f32.xlu0 %v401
    %v403 = vpop.xlane.xlu0 %402
    %v404 = vsel %vm391, %v387, -inf
    %405 = vmax.xlane.f32.xlu0 %v404
    %v406 = vpop.xlane.xlu0 %405
    %v407 = vsel %vm391, %v388, -inf
    %408 = vmax.xlane.f32.xlu0 %v407
    %v409 = vpop.xlane.xlu0 %408
    %v410 = vsel %vm391, %v389, -inf
    %411 = vmax.xlane.f32.xlu0 %v410
    %v412 = vpop.xlane.xlu0 %411
    %v413 = vsel %vm391, %v390, -inf
    %414 = vmax.xlane.f32.xlu0 %v413
    %v415 = vpop.xlane.xlu0 %414
    %v416 = vsub.f32 %v383, %v394
    %v417 = vsub.f32 %v384, %v397
    %v418 = vsub.f32 %v385, %v400
    %v419 = vsub.f32 %v386, %v403
    %v420 = vsub.f32 %v387, %v406
    %v421 = vsub.f32 %v388, %v409
    %v422 = vsub.f32 %v389, %v412
    %v423 = vsub.f32 %v390, %v415
    %v424 = vmul.f32 %v416, 1.442695
    %v425 = vpow.pop %v424
    %v426 = vmul.f32 %v417, 1.442695
    %v427 = vpow.pop %v426
    %v428 = vmul.f32 %v418, 1.442695
    %v429 = vpow.pop %v428
    %v430 = vmul.f32 %v419, 1.442695
    %v431 = vpow.pop %v430
    %v432 = vmul.f32 %v420, 1.442695
    %v433 = vpow.pop %v432
    %v434 = vmul.f32 %v421, 1.442695
    %v435 = vpow.pop %v434
    %v436 = vmul.f32 %v422, 1.442695
    %v437 = vpow.pop %v436
    %v438 = vmul.f32 %v423, 1.442695
    %v439 = vpow.pop %v438
    %v440 = vsel %vm391, %v425, 0.0
    %441 = vadd.xlane.f32.xlu0 %v440
    %v442 = vpop.xlane.xlu0 %441
    %v443 = vsel %vm391, %v427, 0.0
    %444 = vadd.xlane.f32.xlu0 %v443
    %v445 = vpop.xlane.xlu0 %444
    %v446 = vsel %vm391, %v429, 0.0
    %447 = vadd.xlane.f32.xlu0 %v446
    %v448 = vpop.xlane.xlu0 %447
    %v449 = vsel %vm391, %v431, 0.0
    %450 = vadd.xlane.f32.xlu0 %v449
    %v451 = vpop.xlane.xlu0 %450
    %v452 = vsel %vm391, %v433, 0.0
    %453 = vadd.xlane.f32.xlu0 %v452
    %v454 = vpop.xlane.xlu0 %453
    %v455 = vsel %vm391, %v435, 0.0
    %456 = vadd.xlane.f32.xlu0 %v455
    %v457 = vpop.xlane.xlu0 %456
    %v458 = vsel %vm391, %v437, 0.0
    %459 = vadd.xlane.f32.xlu0 %v458
    %v460 = vpop.xlane.xlu0 %459
    %v461 = vsel %vm391, %v439, 0.0
    %462 = vadd.xlane.f32.xlu0 %v461
    %v463 = vpop.xlane.xlu0 %462
    %v464 = vrcp.pop %v442
    %v465 = vrcp.pop %v445
    %v466 = vrcp.pop %v448
    %v467 = vrcp.pop %v451
    %v468 = vrcp.pop %v454
    %v469 = vrcp.pop %v457
    %v470 = vrcp.pop %v460
    %v471 = vrcp.pop %v463
    %v472 = vmul.f32 %v425, %v464
    %v473 = vmul.f32 %v427, %v465
    %v474 = vmul.f32 %v429, %v466
    %v475 = vmul.f32 %v431, %v467
    %v476 = vmul.f32 %v433, %v468
    %v477 = vmul.f32 %v435, %v469
    %v478 = vmul.f32 %v437, %v470
    %v479 = vmul.f32 %v439, %v471
    %v480 = vpack.c.bf16 %v473, %v472
    %v481 = vpack.c.bf16 %v475, %v474
    %v482 = vpack.c.bf16 %v477, %v476
    %v483 = vpack.c.bf16 %v479, %v478
    %484 = vrot.lane.b32.xlu0 %v168, 64
    %v485 = vpop.permute.xlu0 %484
    %v488 = vsel %vm391, %v480, 0
    %490 = vmatprep.subr.bf16.mxu0 0
    %491 = vmatpush1.bf16.msra.mxu0 %v485
    %492 = vmatprep.subr.bf16.mxu0 0
    %493 = vmatpush1.bf16.msra.mxu0 0
    %494 = vmatprep.subr.bf16.mxu0 0
    %495 = vmatpush1.bf16.msra.mxu0 0
    %496 = vmatprep.subr.bf16.mxu0 0
    %497 = vmatpush1.bf16.msra.mxu0 0
    %498 = vmatprep.subr.bf16.mxu0 0
    %499 = vmatpush1.bf16.msra.mxu0 0
    %500 = vmatprep.subr.bf16.mxu0 0
    %501 = vmatpush1.bf16.msra.mxu0 0
    %502 = vmatprep.subr.bf16.mxu0 0
    %503 = vmatpush1.bf16.msra.mxu0 0
    %504 = vmatprep.subr.bf16.mxu0 0
    %505 = vmatpush1.bf16.msra.mxu0 0
    %506 = vmatprep.subr.bf16.mxu0 0
    %507 = vmatpush1.bf16.msra.mxu0 0
    %508 = vmatprep.subr.bf16.mxu0 0
    %509 = vmatpush1.bf16.msra.mxu0 0
    %510 = vmatprep.subr.bf16.mxu0 0
    %511 = vmatpush1.bf16.msra.mxu0 0
    %512 = vmatprep.subr.bf16.mxu0 0
    %513 = vmatpush1.bf16.msra.mxu0 0
    %514 = vmatprep.subr.bf16.mxu0 0
    %515 = vmatpush1.bf16.msra.mxu0 0
    %516 = vmatprep.subr.bf16.mxu0 0
    %517 = vmatpush1.bf16.msra.mxu0 0
    %518 = vmatprep.subr.bf16.mxu0 0
    %519 = vmatpush1.bf16.msra.mxu0 0
    %520 = vmatprep.subr.bf16.mxu0 0
    %521 = vmatpush1.bf16.msra.mxu0 0
    %522 = vmatprep.mubr.bf16.mxu0 0
    %523 = vmatmul.mubr.bf16.gmra.mrb[0].mxu0 %v488
    %v524 = vpop.f32.mrb[0].mxu0
    %v525 = vadd.f32 0.0, %v524
    %v526 = vpop.f32.mrb[0].mxu0
    %v527 = vpop.f32.mrb[0].mxu0
    %v528 = vadd.f32 0.0, %v527
    %v529 = vpop.f32.mrb[0].mxu0
    %530 = vdwg.mxu0
    %531 = vrot.lane.b32.xlu0 %v169, 64
    %v532 = vpop.permute.xlu0 %531
    %v535 = vsel %vm391, %v481, 0
    %537 = vmatprep.subr.bf16.mxu0 0
    %538 = vmatpush1.bf16.msra.mxu0 %v532
    %539 = vmatprep.subr.bf16.mxu0 0
    %540 = vmatpush1.bf16.msra.mxu0 0
    %541 = vmatprep.subr.bf16.mxu0 0
    %542 = vmatpush1.bf16.msra.mxu0 0
    %543 = vmatprep.subr.bf16.mxu0 0
    %544 = vmatpush1.bf16.msra.mxu0 0
    %545 = vmatprep.subr.bf16.mxu0 0
    %546 = vmatpush1.bf16.msra.mxu0 0
    %547 = vmatprep.subr.bf16.mxu0 0
    %548 = vmatpush1.bf16.msra.mxu0 0
    %549 = vmatprep.subr.bf16.mxu0 0
    %550 = vmatpush1.bf16.msra.mxu0 0
    %551 = vmatprep.subr.bf16.mxu0 0
    %552 = vmatpush1.bf16.msra.mxu0 0
    %553 = vmatprep.subr.bf16.mxu0 0
    %554 = vmatpush1.bf16.msra.mxu0 0
    %555 = vmatprep.subr.bf16.mxu0 0
    %556 = vmatpush1.bf16.msra.mxu0 0
    %557 = vmatprep.subr.bf16.mxu0 0
    %558 = vmatpush1.bf16.msra.mxu0 0
    %559 = vmatprep.subr.bf16.mxu0 0
    %560 = vmatpush1.bf16.msra.mxu0 0
    %561 = vmatprep.subr.bf16.mxu0 0
    %562 = vmatpush1.bf16.msra.mxu0 0
    %563 = vmatprep.subr.bf16.mxu0 0
    %564 = vmatpush1.bf16.msra.mxu0 0
    %565 = vmatprep.subr.bf16.mxu0 0
    %566 = vmatpush1.bf16.msra.mxu0 0
    %567 = vmatprep.subr.bf16.mxu0 0
    %568 = vmatpush1.bf16.msra.mxu0 0
    %569 = vmatprep.mubr.bf16.mxu0 0
    %570 = vmatmul.mubr.bf16.gmra.mrb[0].mxu0 %v535
    %v571 = vpop.f32.mrb[0].mxu0
    %v572 = vadd.f32 0.0, %v571
    %v573 = vpop.f32.mrb[0].mxu0
    %v574 = vpop.f32.mrb[0].mxu0
    %v575 = vadd.f32 0.0, %v574
    %v576 = vpop.f32.mrb[0].mxu0
    %577 = vdwg.mxu0
    %578 = vrot.lane.b32.xlu0 %v170, 64
    %v579 = vpop.permute.xlu0 %578
    %v582 = vsel %vm391, %v482, 0
    %584 = vmatprep.subr.bf16.mxu0 0
    %585 = vmatpush1.bf16.msra.mxu0 %v579
    %586 = vmatprep.subr.bf16.mxu0 0
    %587 = vmatpush1.bf16.msra.mxu0 0
    %588 = vmatprep.subr.bf16.mxu0 0
    %589 = vmatpush1.bf16.msra.mxu0 0
    %590 = vmatprep.subr.bf16.mxu0 0
    %591 = vmatpush1.bf16.msra.mxu0 0
    %592 = vmatprep.subr.bf16.mxu0 0
    %593 = vmatpush1.bf16.msra.mxu0 0
    %594 = vmatprep.subr.bf16.mxu0 0
    %595 = vmatpush1.bf16.msra.mxu0 0
    %596 = vmatprep.subr.bf16.mxu0 0
    %597 = vmatpush1.bf16.msra.mxu0 0
    %598 = vmatprep.subr.bf16.mxu0 0
    %599 = vmatpush1.bf16.msra.mxu0 0
    %600 = vmatprep.subr.bf16.mxu0 0
    %601 = vmatpush1.bf16.msra.mxu0 0
    %602 = vmatprep.subr.bf16.mxu0 0
    %603 = vmatpush1.bf16.msra.mxu0 0
    %604 = vmatprep.subr.bf16.mxu0 0
    %605 = vmatpush1.bf16.msra.mxu0 0
    %606 = vmatprep.subr.bf16.mxu0 0
    %607 = vmatpush1.bf16.msra.mxu0 0
    %608 = vmatprep.subr.bf16.mxu0 0
    %609 = vmatpush1.bf16.msra.mxu0 0
    %610 = vmatprep.subr.bf16.mxu0 0
    %611 = vmatpush1.bf16.msra.mxu0 0
    %612 = vmatprep.subr.bf16.mxu0 0
    %613 = vmatpush1.bf16.msra.mxu0 0
    %614 = vmatprep.subr.bf16.mxu0 0
    %615 = vmatpush1.bf16.msra.mxu0 0
    %616 = vmatprep.mubr.bf16.mxu0 0
    %617 = vmatmul.mubr.bf16.gmra.mrb[0].mxu0 %v582
    %v618 = vpop.f32.mrb[0].mxu0
    %v619 = vadd.f32 0.0, %v618
    %v620 = vpop.f32.mrb[0].mxu0
    %v621 = vpop.f32.mrb[0].mxu0
    %v622 = vadd.f32 0.0, %v621
    %v623 = vpop.f32.mrb[0].mxu0
    %624 = vdwg.mxu0
    %625 = vrot.lane.b32.xlu0 %v171, 64
    %v626 = vpop.permute.xlu0 %625
    %v629 = vsel %vm391, %v483, 0
    %631 = vmatprep.subr.bf16.mxu0 0
    %632 = vmatpush1.bf16.msra.mxu0 %v626
    %633 = vmatprep.subr.bf16.mxu0 0
    %634 = vmatpush1.bf16.msra.mxu0 0
    %635 = vmatprep.subr.bf16.mxu0 0
    %636 = vmatpush1.bf16.msra.mxu0 0
    %637 = vmatprep.subr.bf16.mxu0 0
    %638 = vmatpush1.bf16.msra.mxu0 0
    %639 = vmatprep.subr.bf16.mxu0 0
    %640 = vmatpush1.bf16.msra.mxu0 0
    %641 = vmatprep.subr.bf16.mxu0 0
    %642 = vmatpush1.bf16.msra.mxu0 0
    %643 = vmatprep.subr.bf16.mxu0 0
    %644 = vmatpush1.bf16.msra.mxu0 0
    %645 = vmatprep.subr.bf16.mxu0 0
    %646 = vmatpush1.bf16.msra.mxu0 0
    %647 = vmatprep.subr.bf16.mxu0 0
    %648 = vmatpush1.bf16.msra.mxu0 0
    %649 = vmatprep.subr.bf16.mxu0 0
    %650 = vmatpush1.bf16.msra.mxu0 0
    %651 = vmatprep.subr.bf16.mxu0 0
    %652 = vmatpush1.bf16.msra.mxu0 0
    %653 = vmatprep.subr.bf16.mxu0 0
    %654 = vmatpush1.bf16.msra.mxu0 0
    %655 = vmatprep.subr.bf16.mxu0 0
    %656 = vmatpush1.bf16.msra.mxu0 0
    %657 = vmatprep.subr.bf16.mxu0 0
    %658 = vmatpush1.bf16.msra.mxu0 0
    %659 = vmatprep.subr.bf16.mxu0 0
    %660 = vmatpush1.bf16.msra.mxu0 0
    %661 = vmatprep.subr.bf16.mxu0 0
    %662 = vmatpush1.bf16.msra.mxu0 0
    %663 = vmatprep.mubr.bf16.mxu0 0
    %664 = vmatmul.mubr.bf16.gmra.mrb[0].mxu0 %v629
    %v665 = vpop.f32.mrb[0].mxu0
    %v666 = vadd.f32 0.0, %v665
    %v667 = vpop.f32.mrb[0].mxu0
    %v668 = vpop.f32.mrb[0].mxu0
    %v669 = vadd.f32 0.0, %v668
    %v670 = vpop.f32.mrb[0].mxu0
    %671 = vdwg.mxu0
    %674 = vrot.lane.b32.xlu0 %v572, 8
    %v675 = vpop.permute.xlu0 %674
    %676 = vrot.lane.b32.xlu0 %v575, 8
    %v677 = vpop.permute.xlu0 %676
    %682 = vrot.lane.b32.xlu0 %v619, 16
    %v683 = vpop.permute.xlu0 %682
    %684 = vrot.lane.b32.xlu0 %v622, 16
    %v685 = vpop.permute.xlu0 %684
    %690 = vrot.lane.b32.xlu0 %v666, 24
    %v691 = vpop.permute.xlu0 %690
    %692 = vrot.lane.b32.xlu0 %v669, 24
    %v693 = vpop.permute.xlu0 %692
    %v696 = vsel %vm175, %v525, %v675
    %v697 = vsel %vm175, %v528, %v677
    %v698 = vsel %vm391, %v696, %v683
    %v699 = vsel %vm391, %v697, %v685
    %vm700 = vcmask 195584
    %v701 = vsel %vm700, %v698, %v691
    %v702 = vsel %vm700, %v699, %v693
    %v703 = vpack.c.bf16 %v702, %v701
    %v704 = vld [vmem:[#allocation2] sm:$0xf]
    %v705 = vld [vmem:[#allocation2 + $0x4] sm:$0xf]
    %v706 = vld [vmem:[#allocation2 + $0x8] sm:$0xf]
    %v707 = vld [vmem:[#allocation2 + $0xc] sm:$0xf]
    %v708 = vld [vmem:[%s5] sm:$0x1]
    %v710 = vlaneseq
    %v711 = vshrl.u32 %v710, 7
    %v712 = vsub.s32 0, %v711
    %v713 = vrot.slane %v708, %v712
    %v719 = vunpack.c.l.b16 %v704
    %v720 = vunpack.c.l.b16 %v705
    %v721 = vunpack.c.l.b16 %v706
    %v722 = vunpack.c.l.b16 %v707
    %v723 = vpack.c.b16 %v720, %v719
    %v724 = vpack.c.b16 %v722, %v721
    %v728 = vsel %vm103, %v703, 0
    %730 = vmatprep.subr.bf16.mxu0 0
    %731 = vmatpush1.bf16.msra.mxu0 %v723
    %732 = vmatprep.subr.bf16.mxu0 0
    %733 = vmatpush1.bf16.msra.mxu0 %v724
    %734 = vmatprep.subr.bf16.mxu0 0
    %735 = vmatpush1.bf16.msra.mxu0 0
    %736 = vmatprep.subr.bf16.mxu0 0
    %737 = vmatpush1.bf16.msra.mxu0 0
    %738 = vmatprep.subr.bf16.mxu0 0
    %739 = vmatpush1.bf16.msra.mxu0 0
    %740 = vmatprep.subr.bf16.mxu0 0
    %741 = vmatpush1.bf16.msra.mxu0 0
    %742 = vmatprep.subr.bf16.mxu0 0
    %743 = vmatpush1.bf16.msra.mxu0 0
    %744 = vmatprep.subr.bf16.mxu0 0
    %745 = vmatpush1.bf16.msra.mxu0 0
    %746 = vmatprep.subr.bf16.mxu0 0
    %747 = vmatpush1.bf16.msra.mxu0 0
    %748 = vmatprep.subr.bf16.mxu0 0
    %749 = vmatpush1.bf16.msra.mxu0 0
    %750 = vmatprep.subr.bf16.mxu0 0
    %751 = vmatpush1.bf16.msra.mxu0 0
    %752 = vmatprep.subr.bf16.mxu0 0
    %753 = vmatpush1.bf16.msra.mxu0 0
    %754 = vmatprep.subr.bf16.mxu0 0
    %755 = vmatpush1.bf16.msra.mxu0 0
    %756 = vmatprep.subr.bf16.mxu0 0
    %757 = vmatpush1.bf16.msra.mxu0 0
    %758 = vmatprep.subr.bf16.mxu0 0
    %759 = vmatpush1.bf16.msra.mxu0 0
    %760 = vmatprep.subr.bf16.mxu0 0
    %761 = vmatpush1.bf16.msra.mxu0 0
    %762 = vmatprep.mubr.bf16.mxu0 0
    %763 = vmatmul.mubr.bf16.gmra.mrb[0].mxu0 %v728
    %v764 = vpop.f32.mrb[0].mxu0
    %v765 = vadd.f32 %v713, %v764
    %v766 = vpop.f32.mrb[0].mxu0
    %v767 = vpop.f32.mrb[0].mxu0
    %v768 = vadd.f32 %v713, %v767
    %v769 = vpop.f32.mrb[0].mxu0
    %770 = vdwg.mxu0
    %v771 = vadd.f32 %v765, %v77
    %v772 = vadd.f32 %v768, %v78
    %v773 = vld [vmem:[%s6] sm:$0x1]
    %v774 = vld [vmem:[%s7] sm:$0x1]
    %v775 = vsel %vm103, %v771, 0.0
    %776 = vadd.xlane.f32.xlu0 %v775
    %v777 = vpop.xlane.xlu0 %776
    %v778 = vsel %vm103, %v772, 0.0
    %779 = vadd.xlane.f32.xlu0 %v778
    %v780 = vpop.xlane.xlu0 %779
    %v781 = vrcp.pop 32.0
    %v782 = vmul.f32 %v777, %v781
    %v783 = vmul.f32 %v780, %v781
    %v784 = vsub.f32 %v771, %v782
    %v785 = vsub.f32 %v772, %v783
    %v786 = vmul.f32 %v784, %v784
    %v787 = vmul.f32 %v785, %v785
    %v788 = vsel %vm103, %v786, 0.0
    %789 = vadd.xlane.f32.xlu0 %v788
    %v790 = vpop.xlane.xlu0 %789
    %v791 = vsel %vm103, %v787, 0.0
    %792 = vadd.xlane.f32.xlu0 %v791
    %v793 = vpop.xlane.xlu0 %792
    %v794 = vmul.f32 %v790, %v781
    %v795 = vmul.f32 %v793, %v781
    %v796 = vadd.f32 %v794, 1e-12
    %v797 = vadd.f32 %v795, 1e-12
    %v798 = vrsqrt.pop %v796
    %v799 = vrsqrt.pop %v797
    %v800 = vmul.f32 %v784, %v798
    %v801 = vmul.f32 %v785, %v799
    %v803 = vlaneseq
    %v804 = vshrl.u32 %v803, 7
    %v805 = vsub.s32 0, %v804
    %v806 = vrot.slane %v773, %v805
    %v808 = vmul.f32 %v800, %v806
    %v809 = vmul.f32 %v801, %v806
    %v811 = vlaneseq
    %v812 = vshrl.u32 %v811, 7
    %v813 = vsub.s32 0, %v812
    %v814 = vrot.slane %v774, %v813
    %v816 = vadd.f32 %v808, %v814
    %v817 = vadd.f32 %v809, %v814
    %v818 = vpack.c.bf16 %v817, %v816
    %v819 = vld [vmem:[#allocation5] sm:$0xf]
    %v820 = vld [vmem:[#allocation5 + $0x4] sm:$0xf]
    %v821 = vld [vmem:[#allocation5 + $0x8] sm:$0xf]
    %v822 = vld [vmem:[#allocation5 + $0xc] sm:$0xf]
    %v823 = vld [vmem:[%s9] sm:$0x1]
    %v825 = vlaneseq
    %v826 = vshrl.u32 %v825, 7
    %v827 = vsub.s32 0, %v826
    %v828 = vrot.slane %v823, %v827
    %v834 = vunpack.c.l.b16 %v819
    %v835 = vunpack.c.l.b16 %v820
    %v836 = vunpack.c.l.b16 %v821
    %v837 = vunpack.c.l.b16 %v822
    %v838 = vpack.c.b16 %v835, %v834
    %v839 = vpack.c.b16 %v837, %v836
    %v843 = vsel %vm103, %v818, 0
    %845 = vmatprep.subr.bf16.mxu0 0
    %846 = vmatpush1.bf16.msra.mxu0 %v838
    %847 = vmatprep.subr.bf16.mxu0 0
    %848 = vmatpush1.bf16.msra.mxu0 %v839
    %849 = vmatprep.subr.bf16.mxu0 0
    %850 = vmatpush1.bf16.msra.mxu0 0
    %851 = vmatprep.subr.bf16.mxu0 0
    %852 = vmatpush1.bf16.msra.mxu0 0
    %853 = vmatprep.subr.bf16.mxu0 0
    %854 = vmatpush1.bf16.msra.mxu0 0
    %855 = vmatprep.subr.bf16.mxu0 0
    %856 = vmatpush1.bf16.msra.mxu0 0
    %857 = vmatprep.subr.bf16.mxu0 0
    %858 = vmatpush1.bf16.msra.mxu0 0
    %859 = vmatprep.subr.bf16.mxu0 0
    %860 = vmatpush1.bf16.msra.mxu0 0
    %861 = vmatprep.subr.bf16.mxu0 0
    %862 = vmatpush1.bf16.msra.mxu0 0
    %863 = vmatprep.subr.bf16.mxu0 0
    %864 = vmatpush1.bf16.msra.mxu0 0
    %865 = vmatprep.subr.bf16.mxu0 0
    %866 = vmatpush1.bf16.msra.mxu0 0
    %867 = vmatprep.subr.bf16.mxu0 0
    %868 = vmatpush1.bf16.msra.mxu0 0
    %869 = vmatprep.subr.bf16.mxu0 0
    %870 = vmatpush1.bf16.msra.mxu0 0
    %871 = vmatprep.subr.bf16.mxu0 0
    %872 = vmatpush1.bf16.msra.mxu0 0
    %873 = vmatprep.subr.bf16.mxu0 0
    %874 = vmatpush1.bf16.msra.mxu0 0
    %875 = vmatprep.subr.bf16.mxu0 0
    %876 = vmatpush1.bf16.msra.mxu0 0
    %877 = vmatprep.mubr.bf16.mxu0 0
    %878 = vmatmul.mubr.bf16.gmra.mrb[0].mxu0 %v843
    %v879 = vpop.f32.mrb[0].mxu0
    %v880 = vadd.f32 %v828, %v879
    %v881 = vpop.f32.mrb[0].mxu0
    %v882 = vpop.f32.mrb[0].mxu0
    %v883 = vadd.f32 %v828, %v882
    %v884 = vpop.f32.mrb[0].mxu0
    %885 = vdwg.mxu0
    %v886 = vmul.f32 %v880, 0.5
    %v887 = vmul.f32 %v883, 0.5
    %v888 = vmul.f32 %v880, 0.044715
    %v889 = vmul.f32 %v883, 0.044715
    %v890 = vmul.f32 %v888, %v880
    %v891 = vmul.f32 %v889, %v883
    %v892 = vmul.f32 %v890, %v880
    %v893 = vmul.f32 %v891, %v883
    %v894 = vadd.f32 %v880, %v892
    %v895 = vadd.f32 %v883, %v893
    %v896 = vmul.f32 %v894, 0.7978846
    %v897 = vmul.f32 %v895, 0.7978846
    %v898 = vtanh.pop %v896
    %v899 = vtanh.pop %v897
    %v900 = vadd.f32 %v898, 1.0
    %v901 = vadd.f32 %v899, 1.0
    %v902 = vmul.f32 %v886, %v900
    %v903 = vmul.f32 %v887, %v901
    %v904 = vpack.c.bf16 %v903, %v902
    %v905 = vld [vmem:[%s10] sm:$0xf]
    %v906 = vld [vmem:[%s10 + $0x4] sm:$0xf]
    %v907 = vld [vmem:[%s10 + $0x8] sm:$0xf]
    %v908 = vld [vmem:[%s10 + $0xc] sm:$0xf]
    %v909 = vld [vmem:[%s10 + $0x10] sm:$0xf]
    %v910 = vld [vmem:[%s10 + $0x14] sm:$0xf]
    %v911 = vld [vmem:[%s10 + $0x18] sm:$0xf]
    %v912 = vld [vmem:[%s10 + $0x1c] sm:$0xf]
    %v913 = vld [vmem:[%s11] sm:$0x1]
    %v915 = vlaneseq
    %v916 = vshrl.u32 %v915, 7
    %v917 = vsub.s32 0, %v916
    %v918 = vrot.slane %v913, %v917
    %v928 = vunpack.c.l.b16 %v905
    %v929 = vunpack.c.l.b16 %v906
    %v930 = vunpack.c.l.b16 %v907
    %v931 = vunpack.c.l.b16 %v908
    %v932 = vunpack.c.l.b16 %v909
    %v933 = vunpack.c.l.b16 %v910
    %v934 = vunpack.c.l.b16 %v911
    %v935 = vunpack.c.l.b16 %v912
    %v936 = vpack.c.b16 %v929, %v928
    %v937 = vpack.c.b16 %v931, %v930
    %v938 = vpack.c.b16 %v933, %v932
    %v939 = vpack.c.b16 %v935, %v934
    %vm944 = vcmask 523264
    %v946 = vsel %vm944, %v904, 0
    %948 = vmatprep.subr.bf16.mxu0 0
    %949 = vmatpush1.bf16.msra.mxu0 %v936
    %950 = vmatprep.subr.bf16.mxu0 0
    %951 = vmatpush1.bf16.msra.mxu0 %v937
    %952 = vmatprep.subr.bf16.mxu0 0
    %953 = vmatpush1.bf16.msra.mxu0 %v938
    %954 = vmatprep.subr.bf16.mxu0 0
    %955 = vmatpush1.bf16.msra.mxu0 %v939
    %956 = vmatprep.subr.bf16.mxu0 0
    %957 = vmatpush1.bf16.msra.mxu0 0
    %958 = vmatprep.subr.bf16.mxu0 0
    %959 = vmatpush1.bf16.msra.mxu0 0
    %960 = vmatprep.subr.bf16.mxu0 0
    %961 = vmatpush1.bf16.msra.mxu0 0
    %962 = vmatprep.subr.bf16.mxu0 0
    %963 = vmatpush1.bf16.msra.mxu0 0
    %964 = vmatprep.subr.bf16.mxu0 0
    %965 = vmatpush1.bf16.msra.mxu0 0
    %966 = vmatprep.subr.bf16.mxu0 0
    %967 = vmatpush1.bf16.msra.mxu0 0
    %968 = vmatprep.subr.bf16.mxu0 0
    %969 = vmatpush1.bf16.msra.mxu0 0
    %970 = vmatprep.subr.bf16.mxu0 0
    %971 = vmatpush1.bf16.msra.mxu0 0
    %972 = vmatprep.subr.bf16.mxu0 0
    %973 = vmatpush1.bf16.msra.mxu0 0
    %974 = vmatprep.subr.bf16.mxu0 0
    %975 = vmatpush1.bf16.msra.mxu0 0
    %976 = vmatprep.subr.bf16.mxu0 0
    %977 = vmatpush1.bf16.msra.mxu0 0
    %978 = vmatprep.subr.bf16.mxu0 0
    %979 = vmatpush1.bf16.msra.mxu0 0
    %980 = vmatprep.mubr.bf16.mxu0 0
    %981 = vmatmul.mubr.bf16.gmra.mrb[0].mxu0 %v946
    %v982 = vpop.f32.mrb[0].mxu0
    %v983 = vadd.f32 %v918, %v982
    %v984 = vpop.f32.mrb[0].mxu0
    %v985 = vpop.f32.mrb[0].mxu0
    %v986 = vadd.f32 %v918, %v985
    %v987 = vpop.f32.mrb[0].mxu0
    %988 = vdwg.mxu0
    %v989 = vadd.f32 %v983, %v816
    %v990 = vadd.f32 %v986, %v817
    %v991 = vld [vmem:[%s12] sm:$0x1]
    %v992 = vld [vmem:[%s13] sm:$0x1]
    %v993 = vsel %vm103, %v989, 0.0
    %994 = vadd.xlane.f32.xlu0 %v993
    %v995 = vpop.xlane.xlu0 %994
    %v996 = vsel %vm103, %v990, 0.0
    %997 = vadd.xlane.f32.xlu0 %v996
    %v998 = vpop.xlane.xlu0 %997
    %v999 = vmul.f32 %v995, %v781
    %v1000 = vmul.f32 %v998, %v781
    %v1001 = vsub.f32 %v989, %v999
    %v1002 = vsub.f32 %v990, %v1000
    %v1003 = vmul.f32 %v1001, %v1001
    %v1004 = vmul.f32 %v1002, %v1002
    %v1005 = vsel %vm103, %v1003, 0.0
    %1006 = vadd.xlane.f32.xlu0 %v1005
    %v1007 = vpop.xlane.xlu0 %1006
    %v1008 = vsel %vm103, %v1004, 0.0
    %1009 = vadd.xlane.f32.xlu0 %v1008
    %v1010 = vpop.xlane.xlu0 %1009
    %v1011 = vmul.f32 %v1007, %v781
    %v1012 = vmul.f32 %v1010, %v781
    %v1013 = vadd.f32 %v1011, 1e-12
    %v1014 = vadd.f32 %v1012, 1e-12
    %v1015 = vrsqrt.pop %v1013
    %v1016 = vrsqrt.pop %v1014
    %v1017 = vmul.f32 %v1001, %v1015
    %v1018 = vmul.f32 %v1002, %v1016
    %v1020 = vlaneseq
    %v1021 = vshrl.u32 %v1020, 7
    %v1022 = vsub.s32 0, %v1021
    %v1023 = vrot.slane %v991, %v1022
    %v1025 = vmul.f32 %v1017, %v1023
    %v1026 = vmul.f32 %v1018, %v1023
    %v1028 = vlaneseq
    %v1029 = vshrl.u32 %v1028, 7
    %v1030 = vsub.s32 0, %v1029
    %v1031 = vrot.slane %v992, %v1030
    %v1033 = vadd.f32 %v1025, %v1031
    %v1034 = vadd.f32 %v1026, %v1031
    %1035 = vst.msk [vmem:[#allocation7] sm:$0xff] %vm103, %v1033
    %1036 = vst.msk [vmem:[#allocation7 + $0x8] sm:$0xff] %vm103, %v1034
    // Predicated region
    $region66: #{tpu_custom_call.1} parent=1 // pred_check
      _
    $region67: #{tpu_custom_call.1} parent=1 // pred_check_branch
      %1038 = sbr.rel (0) target = $region69
    $region68: #{tpu_custom_call.1} parent=1 // pred_region
      %s1040 = ssub.s32 256, 256
      %1041 = vsyncadd [#allocation4], %s1040
      %s1042 = sshll.u32 [#allocation7], 4
      %s1043 = int_to_ptr.vmem [resolvable:$true] %s1042
      %1048 = dma.vmem_to_hbm [thread:$0]  %s1043, 256, %s14, [#allocation4], 128, 128, 8
    $region69: #{tpu_custom_call.1} parent=1 // pred_fallthru
      _
    // Predicated region
    $region70: #{tpu_custom_call.1} parent=1 // pred_check
      _
    $region71: #{tpu_custom_call.1} parent=1 // pred_check_branch
      %1050 = sbr.rel (0) target = $region73
    $region72: #{tpu_custom_call.1} parent=1 // pred_region
      %1051 = dma.done [#allocation4], 256
    $region73: #{tpu_custom_call.1} parent=1 // pred_fallthru
      _
    %1052 = vsyncpa [#allocation3], 1
    %1053 = vsyncpa [#allocation6], 1
    %1054 = vsyncpa [#allocation4], 1

</llo_original>
